<compile_context>
chip_gen: v7x
topology: tpu7x:2x2x1
jax: 0.10.0
libtpu: 0.0.40
codegen_flags: <defaults>
</compile_context>

<pallas_src>
import functools

import jax
import jax.numpy as jnp
from jax import lax
from jax.experimental import pallas as pl
from jax.experimental.pallas import tpu as pltpu

LARGE_NUMBER_FOR_SIGMOID = 500.0
ALPHA = 1.0
_LANE = 128


def _take(a, offset):
    """Cyclic shift along the flattened minor axis: result[k] = a[k + offset].

    The minor axis is a multiple of 128 by construction, so this lowers to an
    XLU lane rotation (free relative to the VALU adds).
    """
    n = a.shape[-1]
    shift = (-offset) % n            # jnp.roll semantics: out[k] = a[k - shift]
    if shift == 0:
        return a
    return pltpu.roll(a, shift, axis=a.ndim - 1)


def _denoise_one_level(x, bias, *, H, W, window_size):
    """x: (O, HWp) f32 with HWp = H*W rounded up to 128; bias: (O, 1) f32."""
    pad = (window_size - 1) // 2
    num_o, hwp = x.shape
    sq = x * x

    flat = lax.broadcasted_iota(jnp.int32, (num_o, hwp), 1)
    if W & (W - 1) == 0:
        col = jnp.bitwise_and(flat, W - 1)       # flat % W, pow2 fast path
    else:
        col = flat % W  # TODO(synk): non-pow2 W relies on i32 remainder lowering
    zero = jnp.zeros_like(sq)

    # Separable all-ones box sum (== Conv2d ones kernel, zero "same" padding).
    # Lane (W) direction: shifts of +/-d on the flattened axis, masked at the
    # row boundaries so nothing leaks across rows / out of the valid range.
    row = sq
    for d in range(1, pad + 1):
        row = row + jnp.where(col < W - d, _take(sq, d), zero)
        row = row + jnp.where(col >= d, _take(sq, -d), zero)

    # Row (H) direction: shifts of +/- d*W, masked at the top/bottom edges.
    box = row
    for d in range(1, pad + 1):
        box = box + jnp.where(flat < (H - d) * W, _take(row, d * W), zero)
        box = box + jnp.where(flat >= d * W, _take(row, -d * W), zero)

    b = jnp.maximum(bias, jnp.float32(0.0))      # forward zeroes a negative bias
    thr = jax.nn.sigmoid(LARGE_NUMBER_FOR_SIGMOID * (ALPHA * box - b))
    return thr * x                               # padded tail of x is 0 -> out 0


def _denoise_kernel(bias_ref, *refs, hw_shapes, window_size):
    """One batch element; all levels and orients in a single invocation.

    bias_ref   : VMEM (L, O, 1) f32 — per-(level, orient) scalar bias
    refs[:L]   : VMEM (O, HWp_l) f32 — flattened input planes per level
    refs[L:]   : VMEM (O, HWp_l) f32 — outputs
    """
    L = len(hw_shapes)
    x_refs, out_refs = refs[:L], refs[L:]
    for l, (H, W) in enumerate(hw_shapes):
        out = _denoise_one_level(
            x_refs[l][...], bias_ref[l], H=H, W=W, window_size=window_size)
        out_refs[l][...] = out.astype(out_refs[l].dtype)


def denoising_neural_network_forward(input_list, biases, window_size):
    """input_list[level] : (N, max_orient, H_l, W_l); input_list[0] is the
    (unused-by-compute) lowpass slot, as in the PyTorch module.

    biases : (max_level, max_orient) f32 — bias of module [level-1][orient].
    Returns output_list matching the PyTorch module (output_list[0] is the
    first-orient slice of the denoised level-1 band, exactly as in PyTorch).
    """
    max_level, max_orient = biases.shape
    assert len(input_list) == max_level + 1

    levels = list(range(1, max_level + 1))
    N = input_list[1].shape[0]
    O = max_orient
    hw_shapes = tuple((input_list[l].shape[2], input_list[l].shape[3]) for l in levels)
    hwp = tuple(pl.cdiv(h * w, _LANE) * _LANE for (h, w) in hw_shapes)

    # Lane-dense flattened inputs; only levels with H*W not a multiple of 128
    # get a tiny zero tail (e.g. 8x8 -> 64 -> 128 lanes).
    xs = []
    for (h, w), p, l in zip(hw_shapes, hwp, levels):
        xf = input_list[l].reshape(N, O, h * w)
        if p != h * w:
            xf = jnp.pad(xf, ((0, 0), (0, 0), (0, p - h * w)))
        xs.append(xf)
    bias3 = biases.astype(jnp.float32).reshape(max_level, O, 1)

    kernel = functools.partial(
        _denoise_kernel, hw_shapes=hw_shapes, window_size=window_size)

    in_specs = [pl.BlockSpec((max_level, O, 1), lambda n: (0, 0, 0))]
    in_specs += [pl.BlockSpec((None, O, p), lambda n: (n, 0, 0)) for p in hwp]
    out_specs = [pl.BlockSpec((None, O, p), lambda n: (n, 0, 0)) for p in hwp]
    out_shape = [jax.ShapeDtypeStruct((N, O, p), input_list[1].dtype) for p in hwp]

    # TODO(synk): for realistic image-pyramid sizes, stripe H with a
    # (window_size-1)-row halo via the index_map and cap VMEM for v7x (64 MiB).
    outs = pl.pallas_call(
        kernel,
        out_shape=out_shape,
        grid=(N,),
        in_specs=in_specs,
        out_specs=out_specs,
        compiler_params=pltpu.CompilerParams(
            dimension_semantics=("parallel",)),
    )(bias3, *xs)

    output_list = [None] * (max_level + 1)
    for i, l in enumerate(levels):
        h, w = hw_shapes[i]
        output_list[l] = outs[i][..., : h * w].reshape(N, O, h, w)
    output_list[0] = output_list[1][:, :1]
    return output_list


def _reference_level(x, bias, window_size):
    """Pure-JAX reference (same fp summation order as the kernel)."""
    pad = (window_size - 1) // 2
    _, _, H, W = x.shape
    b = jnp.maximum(bias, 0.0)[None, :, None, None]
    sq = x * x
    sqp = jnp.pad(sq, ((0, 0), (0, 0), (pad, pad), (pad, pad)))
    row = sqp[:, :, :, pad:pad + W]
    for d in range(1, pad + 1):
        row = row + sqp[:, :, :, pad + d:pad + d + W]
        row = row + sqp[:, :, :, pad - d:pad - d + W]
    box = row[:, :, pad:pad + H, :]
    for d in range(1, pad + 1):
        box = box + row[:, :, pad + d:pad + d + H, :]
        box = box + row[:, :, pad - d:pad - d + H, :]
    thr = jax.nn.sigmoid(LARGE_NUMBER_FOR_SIGMOID * (ALPHA * box - b))
    return thr * x


if __name__ == "__main__":
    max_level = 2
    max_orient = 3
    window_size = 5
    batch = 2

    key = jax.random.PRNGKey(0)
    k_bias, k0, k1, k2 = jax.random.split(key, 4)

    # Per-(level, orient) scalar biases (stand-in for np.random.randn()); the
    # range straddles typical box values so both sigmoid branches and the
    # negative-bias clamp are exercised.
    biases = jax.random.uniform(
        k_bias, (max_level, max_orient), dtype=jnp.float32, minval=-5.0, maxval=35.0)

    # Wavelet-pyramid-like inputs: level 1 = 16x16, level 2 = 8x8; slot 0 is
    # the (unused) lowpass band.
    input_list = [
        jax.random.normal(k0, (batch, 1, 32, 32), dtype=jnp.float32),
        jax.random.normal(k1, (batch, max_orient, 16, 16), dtype=jnp.float32),
        jax.random.normal(k2, (batch, max_orient, 8, 8), dtype=jnp.float32),
    ]

    fwd = jax.jit(denoising_neural_network_forward, static_argnums=2)
    output_list = fwd(input_list, biases, window_size)
    output_list = jax.block_until_ready(output_list)

    # Sanity check against a pure-JAX reference.
    for level in range(1, max_level + 1):
        ref = _reference_level(input_list[level], biases[level - 1], window_size)
        assert jnp.allclose(output_list[level], ref, atol=2e-5, rtol=1e-5), level
    assert jnp.allclose(output_list[0], output_list[1][:, :1])

    print("KERNEL_OK")
</pallas_src>

<mosaic_0001>
module attributes {stable_mosaic.version = 11 : i64} {
  func.func @_denoise_kernel(%arg0: i32, %arg1: memref<2x3x1xf32, #tpu.memory_space<vmem>>, %arg2: memref<1x3x256xf32, #tpu.memory_space<vmem>>, %arg3: memref<1x3x128xf32, #tpu.memory_space<vmem>>, %arg4: memref<1x3x256xf32, #tpu.memory_space<vmem>>, %arg5: memref<1x3x128xf32, #tpu.memory_space<vmem>>) attributes {dimension_semantics = [#tpu.dimension_semantics<parallel>], iteration_bounds = array<i64: 2>, scalar_prefetch = 0 : i64, scratch_operands = 0 : i64, tpu.core_type = #tpu.core_type<tc>, window_params = [{pipeline_mode = #tpu.pipeline_mode<synchronous>, transform_indices = @transform_0, window_bounds = array<i64: 2, 3, 1>}, {transform_indices = @transform_1, window_bounds = array<i64: 1, 3, 256>}, {transform_indices = @transform_2, window_bounds = array<i64: 1, 3, 128>}, {transform_indices = @transform_3, window_bounds = array<i64: 1, 3, 256>}, {transform_indices = @transform_4, window_bounds = array<i64: 1, 3, 128>}]} {
    %c0 = arith.constant 0 : index
    %c0_0 = arith.constant 0 : index
    %c0_1 = arith.constant 0 : index
    %0 = vector.load %arg2[%c0, %c0_0, %c0_1] : memref<1x3x256xf32, #tpu.memory_space<vmem>>, vector<1x3x256xf32>
    %1 = vector.shape_cast %0 : vector<1x3x256xf32> to vector<3x256xf32>
    %c0_2 = arith.constant 0 : index
    %c0_3 = arith.constant 0 : index
    %c0_4 = arith.constant 0 : index
    %2 = vector.load %arg1[%c0_2, %c0_3, %c0_4] : memref<2x3x1xf32, #tpu.memory_space<vmem>>, vector<1x3x1xf32>
    %3 = vector.shape_cast %2 : vector<1x3x1xf32> to vector<3x1xf32>
    %4 = arith.mulf %1, %1 : vector<3x256xf32>
    %5 = tpu.iota {dimensions = array<i32: 1>} : vector<3x256xi32>
    %c15_i32 = arith.constant 15 : i32
    %6 = vector.broadcast %c15_i32 : i32 to vector<3x256xi32>
    %7 = arith.andi %5, %6 : vector<3x256xi32>
    %cst = arith.constant 0.000000e+00 : f32
    %8 = vector.broadcast %cst : f32 to vector<3x256xf32>
    %c15_i32_5 = arith.constant 15 : i32
    %9 = vector.broadcast %c15_i32_5 : i32 to vector<3x256xi32>
    %10 = arith.cmpi slt, %7, %9 : vector<3x256xi32>
    %c255_i32 = arith.constant 255 : i32
    %11 = tpu.dynamic_rotate %4 by %c255_i32 dim 1 : vector<3x256xf32>, i32 -> vector<3x256xf32>
    %12 = arith.select %10, %11, %8 : vector<3x256xi1>, vector<3x256xf32>
    %13 = arith.addf %4, %12 : vector<3x256xf32>
    %c1_i32 = arith.constant 1 : i32
    %14 = vector.broadcast %c1_i32 : i32 to vector<3x256xi32>
    %15 = arith.cmpi sge, %7, %14 : vector<3x256xi32>
    %c1_i32_6 = arith.constant 1 : i32
    %16 = tpu.dynamic_rotate %4 by %c1_i32_6 dim 1 : vector<3x256xf32>, i32 -> vector<3x256xf32>
    %17 = arith.select %15, %16, %8 : vector<3x256xi1>, vector<3x256xf32>
    %18 = arith.addf %13, %17 : vector<3x256xf32>
    %c14_i32 = arith.constant 14 : i32
    %19 = vector.broadcast %c14_i32 : i32 to vector<3x256xi32>
    %20 = arith.cmpi slt, %7, %19 : vector<3x256xi32>
    %c254_i32 = arith.constant 254 : i32
    %21 = tpu.dynamic_rotate %4 by %c254_i32 dim 1 : vector<3x256xf32>, i32 -> vector<3x256xf32>
    %22 = arith.select %20, %21, %8 : vector<3x256xi1>, vector<3x256xf32>
    %23 = arith.addf %18, %22 : vector<3x256xf32>
    %c2_i32 = arith.constant 2 : i32
    %24 = vector.broadcast %c2_i32 : i32 to vector<3x256xi32>
    %25 = arith.cmpi sge, %7, %24 : vector<3x256xi32>
    %c2_i32_7 = arith.constant 2 : i32
    %26 = tpu.dynamic_rotate %4 by %c2_i32_7 dim 1 : vector<3x256xf32>, i32 -> vector<3x256xf32>
    %27 = arith.select %25, %26, %8 : vector<3x256xi1>, vector<3x256xf32>
    %28 = arith.addf %23, %27 : vector<3x256xf32>
    %c240_i32 = arith.constant 240 : i32
    %29 = vector.broadcast %c240_i32 : i32 to vector<3x256xi32>
    %30 = arith.cmpi slt, %5, %29 : vector<3x256xi32>
    %c240_i32_8 = arith.constant 240 : i32
    %31 = tpu.dynamic_rotate %28 by %c240_i32_8 dim 1 : vector<3x256xf32>, i32 -> vector<3x256xf32>
    %32 = arith.select %30, %31, %8 : vector<3x256xi1>, vector<3x256xf32>
    %33 = arith.addf %28, %32 : vector<3x256xf32>
    %c16_i32 = arith.constant 16 : i32
    %34 = vector.broadcast %c16_i32 : i32 to vector<3x256xi32>
    %35 = arith.cmpi sge, %5, %34 : vector<3x256xi32>
    %c16_i32_9 = arith.constant 16 : i32
    %36 = tpu.dynamic_rotate %28 by %c16_i32_9 dim 1 : vector<3x256xf32>, i32 -> vector<3x256xf32>
    %37 = arith.select %35, %36, %8 : vector<3x256xi1>, vector<3x256xf32>
    %38 = arith.addf %33, %37 : vector<3x256xf32>
    %c224_i32 = arith.constant 224 : i32
    %39 = vector.broadcast %c224_i32 : i32 to vector<3x256xi32>
    %40 = arith.cmpi slt, %5, %39 : vector<3x256xi32>
    %c224_i32_10 = arith.constant 224 : i32
    %41 = tpu.dynamic_rotate %28 by %c224_i32_10 dim 1 : vector<3x256xf32>, i32 -> vector<3x256xf32>
    %42 = arith.select %40, %41, %8 : vector<3x256xi1>, vector<3x256xf32>
    %43 = arith.addf %38, %42 : vector<3x256xf32>
    %c32_i32 = arith.constant 32 : i32
    %44 = vector.broadcast %c32_i32 : i32 to vector<3x256xi32>
    %45 = arith.cmpi sge, %5, %44 : vector<3x256xi32>
    %c32_i32_11 = arith.constant 32 : i32
    %46 = tpu.dynamic_rotate %28 by %c32_i32_11 dim 1 : vector<3x256xf32>, i32 -> vector<3x256xf32>
    %47 = arith.select %45, %46, %8 : vector<3x256xi1>, vector<3x256xf32>
    %48 = arith.addf %43, %47 : vector<3x256xf32>
    %cst_12 = arith.constant 0.000000e+00 : f32
    %49 = vector.broadcast %cst_12 : f32 to vector<3x1xf32>
    %50 = arith.maximumf %3, %49 : vector<3x1xf32>
    %cst_13 = arith.constant 1.000000e+00 : f32
    %51 = vector.broadcast %cst_13 : f32 to vector<3x256xf32>
    %52 = arith.mulf %51, %48 : vector<3x256xf32>
    %53 = vector.broadcast %50 : vector<3x1xf32> to vector<3x256xf32>
    %54 = arith.subf %52, %53 : vector<3x256xf32>
    %cst_14 = arith.constant 5.000000e+02 : f32
    %55 = vector.broadcast %cst_14 : f32 to vector<3x256xf32>
    %56 = arith.mulf %55, %54 : vector<3x256xf32>
    %57 = arith.negf %56 : vector<3x256xf32>
    %58 = math.exp %57 : vector<3x256xf32>
    %cst_15 = arith.constant 1.000000e+00 : f32
    %59 = vector.broadcast %cst_15 : f32 to vector<3x256xf32>
    %60 = arith.addf %59, %58 : vector<3x256xf32>
    %61 = arith.divf %59, %60 : vector<3x256xf32>
    %62 = arith.mulf %61, %1 : vector<3x256xf32>
    %c0_16 = arith.constant 0 : index
    %c0_17 = arith.constant 0 : index
    %c0_18 = arith.constant 0 : index
    %63 = vector.load %arg4[%c0_16, %c0_17, %c0_18] : memref<1x3x256xf32, #tpu.memory_space<vmem>>, vector<1x3x256xf32>
    %64 = vector.shape_cast %63 : vector<1x3x256xf32> to vector<3x256xf32>
    %65 = vector.shape_cast %62 : vector<3x256xf32> to vector<1x3x256xf32>
    tpu.vector_store %arg4[%c0_16, %c0_17, %c0_18], %65 {strides = array<i32>} : memref<1x3x256xf32, #tpu.memory_space<vmem>>, vector<1x3x256xf32>,
    %c0_19 = arith.constant 0 : index
    %c0_20 = arith.constant 0 : index
    %c0_21 = arith.constant 0 : index
    %66 = vector.load %arg3[%c0_19, %c0_20, %c0_21] : memref<1x3x128xf32, #tpu.memory_space<vmem>>, vector<1x3x128xf32>
    %67 = vector.shape_cast %66 : vector<1x3x128xf32> to vector<3x128xf32>
    %c1 = arith.constant 1 : index
    %c0_22 = arith.constant 0 : index
    %c0_23 = arith.constant 0 : index
    %68 = vector.load %arg1[%c1, %c0_22, %c0_23] : memref<2x3x1xf32, #tpu.memory_space<vmem>>, vector<1x3x1xf32>
    %69 = vector.shape_cast %68 : vector<1x3x1xf32> to vector<3x1xf32>
    %70 = arith.mulf %67, %67 : vector<3x128xf32>
    %71 = tpu.iota {dimensions = array<i32: 1>} : vector<3x128xi32>
    %c7_i32 = arith.constant 7 : i32
    %72 = vector.broadcast %c7_i32 : i32 to vector<3x128xi32>
    %73 = arith.andi %71, %72 : vector<3x128xi32>
    %cst_24 = arith.constant 0.000000e+00 : f32
    %74 = vector.broadcast %cst_24 : f32 to vector<3x128xf32>
    %c7_i32_25 = arith.constant 7 : i32
    %75 = vector.broadcast %c7_i32_25 : i32 to vector<3x128xi32>
    %76 = arith.cmpi slt, %73, %75 : vector<3x128xi32>
    %c127_i32 = arith.constant 127 : i32
    %77 = tpu.dynamic_rotate %70 by %c127_i32 dim 1 : vector<3x128xf32>, i32 -> vector<3x128xf32>
    %78 = arith.select %76, %77, %74 : vector<3x128xi1>, vector<3x128xf32>
    %79 = arith.addf %70, %78 : vector<3x128xf32>
    %c1_i32_26 = arith.constant 1 : i32
    %80 = vector.broadcast %c1_i32_26 : i32 to vector<3x128xi32>
    %81 = arith.cmpi sge, %73, %80 : vector<3x128xi32>
    %c1_i32_27 = arith.constant 1 : i32
    %82 = tpu.dynamic_rotate %70 by %c1_i32_27 dim 1 : vector<3x128xf32>, i32 -> vector<3x128xf32>
    %83 = arith.select %81, %82, %74 : vector<3x128xi1>, vector<3x128xf32>
    %84 = arith.addf %79, %83 : vector<3x128xf32>
    %c6_i32 = arith.constant 6 : i32
    %85 = vector.broadcast %c6_i32 : i32 to vector<3x128xi32>
    %86 = arith.cmpi slt, %73, %85 : vector<3x128xi32>
    %c126_i32 = arith.constant 126 : i32
    %87 = tpu.dynamic_rotate %70 by %c126_i32 dim 1 : vector<3x128xf32>, i32 -> vector<3x128xf32>
    %88 = arith.select %86, %87, %74 : vector<3x128xi1>, vector<3x128xf32>
    %89 = arith.addf %84, %88 : vector<3x128xf32>
    %c2_i32_28 = arith.constant 2 : i32
    %90 = vector.broadcast %c2_i32_28 : i32 to vector<3x128xi32>
    %91 = arith.cmpi sge, %73, %90 : vector<3x128xi32>
    %c2_i32_29 = arith.constant 2 : i32
    %92 = tpu.dynamic_rotate %70 by %c2_i32_29 dim 1 : vector<3x128xf32>, i32 -> vector<3x128xf32>
    %93 = arith.select %91, %92, %74 : vector<3x128xi1>, vector<3x128xf32>
    %94 = arith.addf %89, %93 : vector<3x128xf32>
    %c56_i32 = arith.constant 56 : i32
    %95 = vector.broadcast %c56_i32 : i32 to vector<3x128xi32>
    %96 = arith.cmpi slt, %71, %95 : vector<3x128xi32>
    %c120_i32 = arith.constant 120 : i32
    %97 = tpu.dynamic_rotate %94 by %c120_i32 dim 1 : vector<3x128xf32>, i32 -> vector<3x128xf32>
    %98 = arith.select %96, %97, %74 : vector<3x128xi1>, vector<3x128xf32>
    %99 = arith.addf %94, %98 : vector<3x128xf32>
    %c8_i32 = arith.constant 8 : i32
    %100 = vector.broadcast %c8_i32 : i32 to vector<3x128xi32>
    %101 = arith.cmpi sge, %71, %100 : vector<3x128xi32>
    %c8_i32_30 = arith.constant 8 : i32
    %102 = tpu.dynamic_rotate %94 by %c8_i32_30 dim 1 : vector<3x128xf32>, i32 -> vector<3x128xf32>
    %103 = arith.select %101, %102, %74 : vector<3x128xi1>, vector<3x128xf32>
    %104 = arith.addf %99, %103 : vector<3x128xf32>
    %c48_i32 = arith.constant 48 : i32
    %105 = vector.broadcast %c48_i32 : i32 to vector<3x128xi32>
    %106 = arith.cmpi slt, %71, %105 : vector<3x128xi32>
    %c112_i32 = arith.constant 112 : i32
    %107 = tpu.dynamic_rotate %94 by %c112_i32 dim 1 : vector<3x128xf32>, i32 -> vector<3x128xf32>
    %108 = arith.select %106, %107, %74 : vector<3x128xi1>, vector<3x128xf32>
    %109 = arith.addf %104, %108 : vector<3x128xf32>
    %c16_i32_31 = arith.constant 16 : i32
    %110 = vector.broadcast %c16_i32_31 : i32 to vector<3x128xi32>
    %111 = arith.cmpi sge, %71, %110 : vector<3x128xi32>
    %c16_i32_32 = arith.constant 16 : i32
    %112 = tpu.dynamic_rotate %94 by %c16_i32_32 dim 1 : vector<3x128xf32>, i32 -> vector<3x128xf32>
    %113 = arith.select %111, %112, %74 : vector<3x128xi1>, vector<3x128xf32>
    %114 = arith.addf %109, %113 : vector<3x128xf32>
    %cst_33 = arith.constant 0.000000e+00 : f32
    %115 = vector.broadcast %cst_33 : f32 to vector<3x1xf32>
    %116 = arith.maximumf %69, %115 : vector<3x1xf32>
    %cst_34 = arith.constant 1.000000e+00 : f32
    %117 = vector.broadcast %cst_34 : f32 to vector<3x128xf32>
    %118 = arith.mulf %117, %114 : vector<3x128xf32>
    %119 = vector.broadcast %116 : vector<3x1xf32> to vector<3x128xf32>
    %120 = arith.subf %118, %119 : vector<3x128xf32>
    %cst_35 = arith.constant 5.000000e+02 : f32
    %121 = vector.broadcast %cst_35 : f32 to vector<3x128xf32>
    %122 = arith.mulf %121, %120 : vector<3x128xf32>
    %123 = arith.negf %122 : vector<3x128xf32>
    %124 = math.exp %123 : vector<3x128xf32>
    %cst_36 = arith.constant 1.000000e+00 : f32
    %125 = vector.broadcast %cst_36 : f32 to vector<3x128xf32>
    %126 = arith.addf %125, %124 : vector<3x128xf32>
    %127 = arith.divf %125, %126 : vector<3x128xf32>
    %128 = arith.mulf %127, %67 : vector<3x128xf32>
    %c0_37 = arith.constant 0 : index
    %c0_38 = arith.constant 0 : index
    %c0_39 = arith.constant 0 : index
    %129 = vector.load %arg5[%c0_37, %c0_38, %c0_39] : memref<1x3x128xf32, #tpu.memory_space<vmem>>, vector<1x3x128xf32>
    %130 = vector.shape_cast %129 : vector<1x3x128xf32> to vector<3x128xf32>
    %131 = vector.shape_cast %128 : vector<3x128xf32> to vector<1x3x128xf32>
    tpu.vector_store %arg5[%c0_37, %c0_38, %c0_39], %131 {strides = array<i32>} : memref<1x3x128xf32, #tpu.memory_space<vmem>>, vector<1x3x128xf32>,
    return
  }
  func.func @transform_0(%arg0: i32) -> (i32, i32, i32) {
    %c0_i32 = arith.constant 0 : i32
    %c0_i32_0 = arith.constant 0 : i32
    %c0_i32_1 = arith.constant 0 : i32
    %c0_i32_2 = arith.constant 0 : i32
    return %c0_i32, %c0_i32_0, %c0_i32_1 : i32, i32, i32
  }
  func.func @transform_1(%arg0: i32) -> (i32, i32, i32) {
    %c0_i32 = arith.constant 0 : i32
    %c0_i32_0 = arith.constant 0 : i32
    %c0_i32_1 = arith.constant 0 : i32
    return %arg0, %c0_i32, %c0_i32_0 : i32, i32, i32
  }
  func.func @transform_2(%arg0: i32) -> (i32, i32, i32) {
    %c0_i32 = arith.constant 0 : i32
    %c0_i32_0 = arith.constant 0 : i32
    %c0_i32_1 = arith.constant 0 : i32
    return %arg0, %c0_i32, %c0_i32_0 : i32, i32, i32
  }
  func.func @transform_3(%arg0: i32) -> (i32, i32, i32) {
    %c0_i32 = arith.constant 0 : i32
    %c0_i32_0 = arith.constant 0 : i32
    %c0_i32_1 = arith.constant 0 : i32
    return %arg0, %c0_i32, %c0_i32_0 : i32, i32, i32
  }
  func.func @transform_4(%arg0: i32) -> (i32, i32, i32) {
    %c0_i32 = arith.constant 0 : i32
    %c0_i32_0 = arith.constant 0 : i32
    %c0_i32_1 = arith.constant 0 : i32
    return %arg0, %c0_i32, %c0_i32_0 : i32, i32, i32
  }
}

</mosaic_0001>

<llo_original>
// kernel: denoising_neural_network_forward.1
$region0: #{denoising_neural_network_forward.1}
  #allocation0 [shape = 'u32[]', space=smem, size = 0x4, offset = 0x4, fixed_abs, tag = 'smem constant byte address 0x4 - core index']
  #allocation1 [shape = 'u32[144,128]{1,0:T(1,128)}', space=vmem, size = 0x12000, scoped, tag = 'internal scratch']
  %s0 = inlined_call_operand.vmem [shape: f32[2,3,1], index: 0, kind: input, shape index: {}]
  %s1 = inlined_call_operand.vmem [shape: f32[2,3,256], index: 1, kind: input, shape index: {}]
  %s2 = inlined_call_operand.vmem [shape: f32[2,3,128], index: 2, kind: input, shape index: {}]
  %s3 = inlined_call_operand.vmem [shape: f32[2,3,256], index: 3, kind: output, shape index: {0}]
  %s4 = inlined_call_operand.vmem [shape: f32[2,3,128], index: 4, kind: output, shape index: {1}]
  %5 = xla_tuple %s3, %s4
  %s6 = sld [smem:[#allocation0]]
  $region53: #{denoising_neural_network_forward.1} parent=0
    _
  %s8 = ssub.s32 1, %s6
  %s9 = scalar_select 0, %s8, %s6
  loop: start=0, step=1, limit=4
  $region2: #{denoising_neural_network_forward.1} parent=0 // loop_pre_header
    _
  $region3: #{denoising_neural_network_forward.1} parent=0 // loop_header
    %s11 = sphi 0, %s15
    %p12 = scmp.ge.s32.totalorder %s11, 4
    %s19 = sphi 0, %s19
    %s21 = sphi 0, %s19
    %s22 = sphi 0, %s21
    %s36 = sphi 0, %s22
    %s42 = sphi 0, %s44
    %s45 = sphi 0, %s42
    %s46 = sphi 0, %s45
    %s62 = sphi 0, %s46
    %s68 = sphi 0, %s70
    %s71 = sphi 0, %s68
    %s72 = sphi 0, %s71
    %s88 = sphi 0, %s72
    %s94 = sphi 0, %s96
    %s97 = sphi 0, %s94
    %s98 = sphi 0, %s97
    %s114 = sphi 0, %s98
    %s120 = sphi 0, %s122
    %s123 = sphi 0, %s120
    %s124 = sphi 0, %s123
    %s140 = sphi 0, %s124
  $region4: #{denoising_neural_network_forward.1} parent=0 // loop_header_branch
    %14 = sbr.rel (%p12) target = $region8
  $region5: #{denoising_neural_network_forward.1} parent=0 // loop_body
    %s16 = ssub.s32 %s11, 1
    %s17 = ssub.s32 %s11, 2
    %s18 = sadd.s32 %s11, 1
    %s20 = sadd.s32 %s19, 1
    %p23 = scmp.eq.s32.totalorder %s11, 1
    %p24 = scmp.ne.s32.totalorder %s19, %s21
    %p25 = scmp.eq.s32.totalorder %s11, 0
    %p26 = por %p24, %p25
    %p27 = scmp.ne.s32.totalorder %s19, %s21
    %p28 = scmp.eq.s32.totalorder %s16, 1
    %p29 = por %p27, %p28
    %p30 = scmp.ne.s32.totalorder %s21, %s22
    %p31 = scmp.eq.s32.totalorder %s16, 0
    %p32 = por %p30, %p31
    %p33 = scmp.ne.s32.totalorder %s21, %s22
    %p34 = scmp.eq.s32.totalorder %s17, 1
    %p35 = por %p33, %p34
    %p37 = scmp.ne.s32.totalorder %s22, %s36
    %p38 = scmp.eq.s32.totalorder %s17, 0
    %p39 = por %p37, %p38
    %s40 = ssub.s32 %s11, %s18
    %p41 = scmp.eq.s32.totalorder %s40, 0
    %s43 = sadd.s32 %s42, 1
    %s44 = scalar_select %p41, %s42, %s43
    %p47 = pneg %p41
    %p48 = scmp.eq.s32.totalorder %s11, 1
    %p49 = por %p47, %p48
    %p50 = scmp.ne.s32.totalorder %s42, %s45
    %p51 = scmp.eq.s32.totalorder %s11, 0
    %p52 = por %p50, %p51
    %p53 = scmp.ne.s32.totalorder %s42, %s45
    %p54 = scmp.eq.s32.totalorder %s16, 1
    %p55 = por %p53, %p54
    %p56 = scmp.ne.s32.totalorder %s45, %s46
    %p57 = scmp.eq.s32.totalorder %s16, 0
    %p58 = por %p56, %p57
    %p59 = scmp.ne.s32.totalorder %s45, %s46
    %p60 = scmp.eq.s32.totalorder %s17, 1
    %p61 = por %p59, %p60
    %p63 = scmp.ne.s32.totalorder %s46, %s62
    %p64 = scmp.eq.s32.totalorder %s17, 0
    %p65 = por %p63, %p64
    %s66 = ssub.s32 %s11, %s18
    %p67 = scmp.eq.s32.totalorder %s66, 0
    %s69 = sadd.s32 %s68, 1
    %s70 = scalar_select %p67, %s68, %s69
    %p73 = pneg %p67
    %p74 = scmp.eq.s32.totalorder %s11, 1
    %p75 = por %p73, %p74
    %p76 = scmp.ne.s32.totalorder %s68, %s71
    %p77 = scmp.eq.s32.totalorder %s11, 0
    %p78 = por %p76, %p77
    %p79 = scmp.ne.s32.totalorder %s68, %s71
    %p80 = scmp.eq.s32.totalorder %s16, 1
    %p81 = por %p79, %p80
    %p82 = scmp.ne.s32.totalorder %s71, %s72
    %p83 = scmp.eq.s32.totalorder %s16, 0
    %p84 = por %p82, %p83
    %p85 = scmp.ne.s32.totalorder %s71, %s72
    %p86 = scmp.eq.s32.totalorder %s17, 1
    %p87 = por %p85, %p86
    %p89 = scmp.ne.s32.totalorder %s72, %s88
    %p90 = scmp.eq.s32.totalorder %s17, 0
    %p91 = por %p89, %p90
    %s92 = ssub.s32 %s11, %s18
    %p93 = scmp.eq.s32.totalorder %s92, 0
    %s95 = sadd.s32 %s94, 1
    %s96 = scalar_select %p93, %s94, %s95
    %p99 = pneg %p93
    %p100 = scmp.eq.s32.totalorder %s11, 1
    %p101 = por %p99, %p100
    %p102 = scmp.ne.s32.totalorder %s94, %s97
    %p103 = scmp.eq.s32.totalorder %s11, 0
    %p104 = por %p102, %p103
    %p105 = scmp.ne.s32.totalorder %s94, %s97
    %p106 = scmp.eq.s32.totalorder %s16, 1
    %p107 = por %p105, %p106
    %p108 = scmp.ne.s32.totalorder %s97, %s98
    %p109 = scmp.eq.s32.totalorder %s16, 0
    %p110 = por %p108, %p109
    %p111 = scmp.ne.s32.totalorder %s97, %s98
    %p112 = scmp.eq.s32.totalorder %s17, 1
    %p113 = por %p111, %p112
    %p115 = scmp.ne.s32.totalorder %s98, %s114
    %p116 = scmp.eq.s32.totalorder %s17, 0
    %p117 = por %p115, %p116
    %s118 = ssub.s32 %s11, %s18
    %p119 = scmp.eq.s32.totalorder %s118, 0
    %s121 = sadd.s32 %s120, 1
    %s122 = scalar_select %p119, %s120, %s121
    %p125 = pneg %p119
    %p126 = scmp.eq.s32.totalorder %s11, 1
    %p127 = por %p125, %p126
    %p128 = scmp.ne.s32.totalorder %s120, %s123
    %p129 = scmp.eq.s32.totalorder %s11, 0
    %p130 = por %p128, %p129
    %p131 = scmp.ne.s32.totalorder %s120, %s123
    %p132 = scmp.eq.s32.totalorder %s16, 1
    %p133 = por %p131, %p132
    %p134 = scmp.ne.s32.totalorder %s123, %s124
    %p135 = scmp.eq.s32.totalorder %s16, 0
    %p136 = por %p134, %p135
    %p137 = scmp.ne.s32.totalorder %s123, %s124
    %p138 = scmp.eq.s32.totalorder %s17, 1
    %p139 = por %p137, %p138
    %p141 = scmp.ne.s32.totalorder %s124, %s140
    %p142 = scmp.eq.s32.totalorder %s17, 0
    %p143 = por %p141, %p142
    %p144 = scmp.le.s32.totalorder 1, %s11
    %p145 = scmp.lt.s32.totalorder %s11, 3
    %p146 = pnand %p144, %p145
    %p147 = pneg %p146
    // Predicated region
    $region9: #{denoising_neural_network_forward.1} parent=5 // pred_check
      _
    $region10: #{denoising_neural_network_forward.1} parent=5 // pred_check_branch
      %149 = sbr.rel (%p146) target = $region12
    $region11: #{denoising_neural_network_forward.1} parent=5 // pred_region
      %s150 = ssub.s32 %s11, 1
      // Predicated region
      $region13: #{denoising_neural_network_forward.1} parent=11 // pred_check
        %p151 = pneg %p32
      $region14: #{denoising_neural_network_forward.1} parent=11 // pred_check_branch
        %153 = sbr.rel (%p151) target = $region16
      $region15: #{denoising_neural_network_forward.1} parent=11 // pred_region
        _
      $region16: #{denoising_neural_network_forward.1} parent=11 // pred_fallthru
        _
    $region12: #{denoising_neural_network_forward.1} parent=5 // pred_fallthru
      _
    %p154 = scmp.lt.s32.totalorder %s11, 2
    // Predicated region
    $region17: #{denoising_neural_network_forward.1} parent=5 // pred_check
      %p155 = pneg %p154
    $region18: #{denoising_neural_network_forward.1} parent=5 // pred_check_branch
      %157 = sbr.rel (%p155) target = $region20
    $region19: #{denoising_neural_network_forward.1} parent=5 // pred_region
      // Predicated region
      $region21: #{denoising_neural_network_forward.1} parent=19 // pred_check
        %p158 = pneg %p52
      $region22: #{denoising_neural_network_forward.1} parent=19 // pred_check_branch
        %160 = sbr.rel (%p158) target = $region24
      $region23: #{denoising_neural_network_forward.1} parent=19 // pred_region
        %p161 = scmp.lt.s32.totalorder %s11, 1
        %s162 = scalar_select %p161, %s11, 1
        %s163 = smul.addr %s162, 2
        %s164 = smul.addr %s163, 4
        %s165 = scalar_lea.vmem %s1, %s164
      $region24: #{denoising_neural_network_forward.1} parent=19 // pred_fallthru
        _
      // Predicated region
      $region25: #{denoising_neural_network_forward.1} parent=19 // pred_check
        %p166 = pneg %p78
      $region26: #{denoising_neural_network_forward.1} parent=19 // pred_check_branch
        %168 = sbr.rel (%p166) target = $region28
      $region27: #{denoising_neural_network_forward.1} parent=19 // pred_region
        %p169 = scmp.lt.s32.totalorder %s11, 1
        %s170 = scalar_select %p169, %s11, 1
        %s171 = smul.addr %s170, 4
        %s172 = scalar_lea.vmem %s2, %s171
      $region28: #{denoising_neural_network_forward.1} parent=19 // pred_fallthru
        _
    $region20: #{denoising_neural_network_forward.1} parent=5 // pred_fallthru
      _
    %p173 = scmp.le.s32.totalorder 1, %s11
    %p174 = scmp.lt.s32.totalorder %s11, 3
    %p175 = pnand %p173, %p174
    %p176 = pneg %p175
    // Predicated region
    $region29: #{denoising_neural_network_forward.1} parent=5 // pred_check
      _
    $region30: #{denoising_neural_network_forward.1} parent=5 // pred_check_branch
      %178 = sbr.rel (%p175) target = $region32
    $region31: #{denoising_neural_network_forward.1} parent=5 // pred_region
      %s179 = ssub.s32 %s11, 1
      %p180 = pneg %p32
      %p181 = pneg %p29
      %p182 = scmp.lt.s32.totalorder %s16, 1
      %s183 = scalar_select %p182, %s16, 1
      %s184 = smul.addr %s183, 2
      %s185 = smul.addr %s184, 4
      %s186 = scalar_lea.vmem %s1, %s185
      %p187 = pneg %p58
      %p188 = pneg %p55
      %p189 = scmp.lt.s32.totalorder %s16, 1
      %s190 = scalar_select %p189, %s16, 1
      %s191 = smul.addr %s190, 4
      %s192 = scalar_lea.vmem %s2, %s191
      %p193 = pneg %p84
      %p194 = pneg %p81
      %p195 = pneg %p110
      %p196 = pneg %p107
      %p197 = scmp.lt.s32.totalorder %s16, 1
      %s198 = scalar_select %p197, %s16, 1
      %s199 = smul.addr %s198, 2
      %s200 = smul.addr %s199, 4
      %s201 = scalar_lea.vmem %s3, %s200
      %p202 = pneg %p136
      %p203 = pneg %p133
      %p204 = scmp.lt.s32.totalorder %s16, 1
      %s205 = scalar_select %p204, %s16, 1
      %s206 = smul.addr %s205, 4
      %s207 = scalar_lea.vmem %s4, %s206
      %p208 = scmp.lt.s32.totalorder %s16, 1
      %s209 = scalar_select %p208, %s16, 1
      %s210 = smul.addr %s209, 2
      %s211 = smul.addr %s210, 4
      %s212 = scalar_lea.vmem %s1, %s211
      %p213 = scmp.lt.s32.totalorder %s16, 1
      %s214 = scalar_select %p213, %s16, 1
      %s215 = smul.addr %s214, 4
      %s216 = scalar_lea.vmem %s2, %s215
      %p217 = scmp.lt.s32.totalorder %s16, 1
      %s218 = scalar_select %p217, %s16, 1
      %s219 = smul.addr %s218, 2
      %s220 = smul.addr %s219, 4
      %s221 = scalar_lea.vmem %s3, %s220
      %p222 = scmp.lt.s32.totalorder %s16, 1
      %s223 = scalar_select %p222, %s16, 1
      %s224 = smul.addr %s223, 4
      %s225 = scalar_lea.vmem %s4, %s224
      %v226 = vld [vmem:[%s212] sm:$0x77]
      %v227 = vld [vmem:[%s0] sm:$0x7]
      %v228 = vmul.f32 %v226, %v226
      %v229 = vlaneseq
      %v230 = vand.u32 %v229, 127
      %v231 = vadd.s32 %v230, 128
      %v232 = vand.u32 %v230, 15
      %v233 = vand.u32 %v231, 15
      %vm234 = vcmp.lt.s32.totalorder %v232, 15
      %vm235 = vcmp.lt.s32.totalorder %v233, 15
      %v237 = vcombine.high %v228, %v228
      %239 = vrot.lane.b32.xlu0 %v228, 127
      %v240 = vpop.permute.xlu0 %239
      %241 = vrot.lane.b32.xlu0 %v237, 127
      %v242 = vpop.permute.xlu0 %241
      %vm243 = vcmp.lt.s32.totalorder %v230, 127
      %v244 = vsel %vm243, %v240, %v242
      %v245 = vsel %vm243, %v242, %v240
      %v246 = vsel %vm234, %v244, 0.0
      %v247 = vsel %vm235, %v245, 0.0
      %v250 = vcombine.low %v246, %v247
      %v252 = vadd.f32 %v228, %v250
      %vm253 = vcmp.ge.s32.totalorder %v232, 1
      %vm254 = vcmp.ge.s32.totalorder %v233, 1
      %255 = vrot.lane.b32.xlu0 %v228, 1
      %v256 = vpop.permute.xlu0 %255
      %257 = vrot.lane.b32.xlu0 %v237, 1
      %v258 = vpop.permute.xlu0 %257
      %vm259 = vcmp.lt.s32.totalorder %v230, 1
      %v260 = vsel %vm259, %v256, %v258
      %v261 = vsel %vm259, %v258, %v256
      %v262 = vsel %vm253, %v261, 0.0
      %v263 = vsel %vm254, %v260, 0.0
      %v266 = vcombine.low %v262, %v263
      %v268 = vadd.f32 %v252, %v266
      %vm269 = vcmp.lt.s32.totalorder %v232, 14
      %vm270 = vcmp.lt.s32.totalorder %v233, 14
      %271 = vrot.lane.b32.xlu0 %v228, 126
      %v272 = vpop.permute.xlu0 %271
      %273 = vrot.lane.b32.xlu0 %v237, 126
      %v274 = vpop.permute.xlu0 %273
      %vm275 = vcmp.lt.s32.totalorder %v230, 126
      %v276 = vsel %vm275, %v272, %v274
      %v277 = vsel %vm275, %v274, %v272
      %v278 = vsel %vm269, %v276, 0.0
      %v279 = vsel %vm270, %v277, 0.0
      %v282 = vcombine.low %v278, %v279
      %v284 = vadd.f32 %v268, %v282
      %vm285 = vcmp.ge.s32.totalorder %v232, 2
      %vm286 = vcmp.ge.s32.totalorder %v233, 2
      %287 = vrot.lane.b32.xlu0 %v228, 2
      %v288 = vpop.permute.xlu0 %287
      %289 = vrot.lane.b32.xlu0 %v237, 2
      %v290 = vpop.permute.xlu0 %289
      %vm291 = vcmp.lt.s32.totalorder %v230, 2
      %v292 = vsel %vm291, %v288, %v290
      %v293 = vsel %vm291, %v290, %v288
      %v294 = vsel %vm285, %v293, 0.0
      %v295 = vsel %vm286, %v292, 0.0
      %v298 = vcombine.low %v294, %v295
      %v300 = vadd.f32 %v284, %v298
      %vm301 = vcmp.lt.s32.totalorder %v230, 240
      %vm302 = vcmp.lt.s32.totalorder %v231, 240
      %v304 = vcombine.high %v300, %v300
      %306 = vrot.lane.b32.xlu0 %v300, 112
      %v307 = vpop.permute.xlu0 %306
      %308 = vrot.lane.b32.xlu0 %v304, 112
      %v309 = vpop.permute.xlu0 %308
      %vm310 = vcmp.lt.s32.totalorder %v230, 112
      %v311 = vsel %vm310, %v307, %v309
      %v312 = vsel %vm310, %v309, %v307
      %v313 = vsel %vm301, %v311, 0.0
      %v314 = vsel %vm302, %v312, 0.0
      %v317 = vcombine.low %v313, %v314
      %v319 = vadd.f32 %v300, %v317
      %vm320 = vcmp.ge.s32.totalorder %v230, 16
      %vm321 = vcmp.ge.s32.totalorder %v231, 16
      %322 = vrot.lane.b32.xlu0 %v300, 16
      %v323 = vpop.permute.xlu0 %322
      %324 = vrot.lane.b32.xlu0 %v304, 16
      %v325 = vpop.permute.xlu0 %324
      %vm326 = vcmp.lt.s32.totalorder %v230, 16
      %v327 = vsel %vm326, %v323, %v325
      %v328 = vsel %vm326, %v325, %v323
      %v329 = vsel %vm320, %v328, 0.0
      %v330 = vsel %vm321, %v327, 0.0
      %v333 = vcombine.low %v329, %v330
      %v335 = vadd.f32 %v319, %v333
      %vm336 = vcmp.lt.s32.totalorder %v230, 224
      %vm337 = vcmp.lt.s32.totalorder %v231, 224
      %338 = vrot.lane.b32.xlu0 %v300, 96
      %v339 = vpop.permute.xlu0 %338
      %340 = vrot.lane.b32.xlu0 %v304, 96
      %v341 = vpop.permute.xlu0 %340
      %vm342 = vcmp.lt.s32.totalorder %v230, 96
      %v343 = vsel %vm342, %v339, %v341
      %v344 = vsel %vm342, %v341, %v339
      %v345 = vsel %vm336, %v343, 0.0
      %v346 = vsel %vm337, %v344, 0.0
      %v349 = vcombine.low %v345, %v346
      %v351 = vadd.f32 %v335, %v349
      %vm352 = vcmp.ge.s32.totalorder %v230, 32
      %vm353 = vcmp.ge.s32.totalorder %v231, 32
      %354 = vrot.lane.b32.xlu0 %v300, 32
      %v355 = vpop.permute.xlu0 %354
      %356 = vrot.lane.b32.xlu0 %v304, 32
      %v357 = vpop.permute.xlu0 %356
      %vm358 = vcmp.lt.s32.totalorder %v230, 32
      %v359 = vsel %vm358, %v355, %v357
      %v360 = vsel %vm358, %v357, %v355
      %v361 = vsel %vm352, %v360, 0.0
      %v362 = vsel %vm353, %v359, 0.0
      %v365 = vcombine.low %v361, %v362
      %v367 = vadd.f32 %v351, %v365
      %v368 = vmax.f32 %v227, 0.0
      %370 = vset.pattern.permute.xlu0 0
      %371 = vperm.xlu0 %370, %v368
      %v372 = vpop.permute.xlu0 %371
      %v374 = vunpack.c.l.s4 839922192
      %v375 = vunpack.c.0.s8 %v374
      %v376 = vlaneseq
      %v377 = vshrl.u32 %v376, 7
      %v378 = vsub.s32 %v375, %v377
      %v379 = vrot.slane %v372, %v378
      %v381 = vsub.f32 %v367, %v379
      %v382 = vmul.f32 %v381, 500.0
      %v383 = vxor.u32 %v382, 2147483648
      %v384 = vmul.f32 %v383, 1.442695
      %v385 = vpow.pop %v384
      %v386 = vadd.f32 %v385, 1.0
      %v387 = vrcp.pop %v386
      %v388 = vmul.f32 1.0, %v387
      %v389 = vmul.f32 %v388, %v226
      %390 = vst [vmem:[%s221] sm:$0x77] %v389
      %v391 = vld [vmem:[%s216] sm:$0x7]
      %s392 = scalar_lea.vmem %s0, 4
      %v393 = vld [vmem:[%s392] sm:$0x7]
      %v394 = vmul.f32 %v391, %v391
      %v395 = vand.u32 %v230, 7
      %vm396 = vcmp.lt.s32.totalorder %v395, 7
      %397 = vrot.lane.b32.xlu0 %v394, 127
      %v398 = vpop.permute.xlu0 %397
      %v399 = vsel %vm396, %v398, 0.0
      %v400 = vadd.f32 %v394, %v399
      %vm401 = vcmp.ge.s32.totalorder %v395, 1
      %402 = vrot.lane.b32.xlu0 %v394, 1
      %v403 = vpop.permute.xlu0 %402
      %v404 = vsel %vm401, %v403, 0.0
      %v405 = vadd.f32 %v400, %v404
      %vm406 = vcmp.lt.s32.totalorder %v395, 6
      %407 = vrot.lane.b32.xlu0 %v394, 126
      %v408 = vpop.permute.xlu0 %407
      %v409 = vsel %vm406, %v408, 0.0
      %v410 = vadd.f32 %v405, %v409
      %vm411 = vcmp.ge.s32.totalorder %v395, 2
      %412 = vrot.lane.b32.xlu0 %v394, 2
      %v413 = vpop.permute.xlu0 %412
      %v414 = vsel %vm411, %v413, 0.0
      %v415 = vadd.f32 %v410, %v414
      %vm416 = vcmp.lt.s32.totalorder %v230, 56
      %417 = vrot.lane.b32.xlu0 %v415, 120
      %v418 = vpop.permute.xlu0 %417
      %v419 = vsel %vm416, %v418, 0.0
      %v420 = vadd.f32 %v415, %v419
      %vm421 = vcmp.ge.s32.totalorder %v230, 8
      %422 = vrot.lane.b32.xlu0 %v415, 8
      %v423 = vpop.permute.xlu0 %422
      %v424 = vsel %vm421, %v423, 0.0
      %v425 = vadd.f32 %v420, %v424
      %vm426 = vcmp.lt.s32.totalorder %v230, 48
      %427 = vrot.lane.b32.xlu0 %v415, 112
      %v428 = vpop.permute.xlu0 %427
      %v429 = vsel %vm426, %v428, 0.0
      %v430 = vadd.f32 %v425, %v429
      %431 = vrot.lane.b32.xlu0 %v415, 16
      %v432 = vpop.permute.xlu0 %431
      %v433 = vsel %vm320, %v432, 0.0
      %v434 = vadd.f32 %v430, %v433
      %v435 = vmax.f32 %v393, 0.0
      %437 = vset.pattern.permute.xlu0 0
      %438 = vperm.xlu0 %437, %v435
      %v439 = vpop.permute.xlu0 %438
      %v441 = vsub.f32 %v434, %v439
      %v442 = vmul.f32 %v441, 500.0
      %v443 = vxor.u32 %v442, 2147483648
      %v444 = vmul.f32 %v443, 1.442695
      %v445 = vpow.pop %v444
      %v446 = vadd.f32 %v445, 1.0
      %v447 = vrcp.pop %v446
      %v448 = vmul.f32 1.0, %v447
      %v449 = vmul.f32 %v448, %v391
      %450 = vst [vmem:[%s225] sm:$0x7] %v449
      %p451 = scmp.lt.s32.totalorder %s16, 1
      %s452 = scalar_select %p451, %s16, 1
      %s453 = smul.addr %s452, 2
      %s454 = smul.addr %s453, 4
      %s455 = scalar_lea.vmem %s3, %s454
      %p456 = scmp.lt.s32.totalorder %s16, 1
      %s457 = scalar_select %p456, %s16, 1
      %s458 = smul.addr %s457, 4
      %s459 = scalar_lea.vmem %s4, %s458
      // Predicated region
      $region33: #{denoising_neural_network_forward.1} parent=31 // pred_check
        %p460 = pneg %p107
      $region34: #{denoising_neural_network_forward.1} parent=31 // pred_check_branch
        %462 = sbr.rel (%p460) target = $region36
      $region35: #{denoising_neural_network_forward.1} parent=31 // pred_region
        _
      $region36: #{denoising_neural_network_forward.1} parent=31 // pred_fallthru
        _
      // Predicated region
      $region37: #{denoising_neural_network_forward.1} parent=31 // pred_check
        %p463 = pneg %p133
      $region38: #{denoising_neural_network_forward.1} parent=31 // pred_check_branch
        %465 = sbr.rel (%p463) target = $region40
      $region39: #{denoising_neural_network_forward.1} parent=31 // pred_region
        _
      $region40: #{denoising_neural_network_forward.1} parent=31 // pred_fallthru
        _
    $region32: #{denoising_neural_network_forward.1} parent=5 // pred_fallthru
      _
    %p466 = scmp.le.s32.totalorder 2, %s11
    // Predicated region
    $region41: #{denoising_neural_network_forward.1} parent=5 // pred_check
      %p467 = pneg %p466
    $region42: #{denoising_neural_network_forward.1} parent=5 // pred_check_branch
      %469 = sbr.rel (%p467) target = $region44
    $region43: #{denoising_neural_network_forward.1} parent=5 // pred_region
      %s470 = ssub.s32 %s11, 2
      // Predicated region
      $region45: #{denoising_neural_network_forward.1} parent=43 // pred_check
        %p471 = pneg %p113
      $region46: #{denoising_neural_network_forward.1} parent=43 // pred_check_branch
        %473 = sbr.rel (%p471) target = $region48
      $region47: #{denoising_neural_network_forward.1} parent=43 // pred_region
        %p474 = scmp.lt.s32.totalorder %s17, 1
        %s475 = scalar_select %p474, %s17, 1
        %s476 = smul.addr %s475, 2
        %s477 = smul.addr %s476, 4
        %s478 = scalar_lea.vmem %s3, %s477
      $region48: #{denoising_neural_network_forward.1} parent=43 // pred_fallthru
        _
      // Predicated region
      $region49: #{denoising_neural_network_forward.1} parent=43 // pred_check
        %p479 = pneg %p139
      $region50: #{denoising_neural_network_forward.1} parent=43 // pred_check_branch
        %481 = sbr.rel (%p479) target = $region52
      $region51: #{denoising_neural_network_forward.1} parent=43 // pred_region
        %p482 = scmp.lt.s32.totalorder %s17, 1
        %s483 = scalar_select %p482, %s17, 1
        %s484 = smul.addr %s483, 4
        %s485 = scalar_lea.vmem %s4, %s484
      $region52: #{denoising_neural_network_forward.1} parent=43 // pred_fallthru
        _
    $region44: #{denoising_neural_network_forward.1} parent=5 // pred_fallthru
      _
  $region6: #{denoising_neural_network_forward.1} parent=0 // loop_footer
    %s15 = sadd.s32 1, %s11
  $region7: #{denoising_neural_network_forward.1} parent=0 // loop_footer_branch
    %10 = sbr.rel target = $region3
  $region8: #{denoising_neural_network_forward.1} parent=0 // loop_exit
    _

</llo_original>
